<compile_context>
chip_gen: v7x
topology: tpu7x:2x2x1
jax: 0.10.0
libtpu: 0.0.40
codegen_flags: <defaults>
</compile_context>

<pallas_src>
import functools

import jax
import jax.numpy as jnp
from jax.experimental import pallas as pl
from jax.experimental.pallas import tpu as pltpu

EPS = 1e-5
LANE = 128  # lane width; hidden dims, output head and param rows pad to this


def _round_up(n, m):
    return ((n + m - 1) // m) * m


def _bn_relu(h, gamma, beta, n_rows):
    """Training-mode BatchNorm1d (biased variance) + ReLU, one-pass form.

    var = max(E[h^2] - mean^2, 0) ; scale = gamma * rsqrt(var + eps)
    y = max(h * scale + (beta - mean * scale), 0)

    Exact rewrite of (h - mean)/sqrt(var+eps)*gamma + beta (the mean
    subtraction also cancels any additive linear bias, hence b1/b2 dropped).
    """
    inv_n = 1.0 / float(n_rows)
    mean = jnp.sum(h, axis=0, keepdims=True) * inv_n
    mean_sq = jnp.sum(h * h, axis=0, keepdims=True) * inv_n
    var = jnp.maximum(mean_sq - mean * mean, 0.0)
    scale = gamma * jax.lax.rsqrt(var + EPS)
    shift = beta - mean * scale
    return jnp.maximum(h * scale + shift, 0.0)


def _mlp_kernel(x_ref, p_ref, out_ref, *, f_pad, batch):
    x = x_ref[...]  # (B, F_pad)

    # Static, 8-sublane-aligned slices of the single packed parameter blob.
    w1 = p_ref[0:f_pad, :]                           # (F_pad, 128)
    w2 = p_ref[f_pad:f_pad + LANE, :]                # (128, 128)
    w3 = p_ref[f_pad + LANE:f_pad + 2 * LANE, :]     # (128, 128)
    pk = p_ref[f_pad + 2 * LANE:f_pad + 2 * LANE + 8, :]  # (8, 128) param tile
    g1, be1 = pk[0:1, :], pk[1:2, :]
    g2, be2 = pk[2:3, :], pk[3:4, :]
    b3 = pk[4:5, :]

    # Layer 1: Linear (bias cancelled by training-mode BN) + BN + ReLU.
    h1 = jnp.dot(x, w1, preferred_element_type=jnp.float32)
    h1 = _bn_relu(h1, g1, be1, batch)

    # Layer 2: Linear + BN + ReLU (all lane-dense, 128 wide).
    h2 = jnp.dot(h1, w2, preferred_element_type=jnp.float32)
    h2 = _bn_relu(h2, g2, be2, batch)

    # Output head: lane-dense Linear + bias, unmasked full-lane store.
    logits = jnp.dot(h2, w3, preferred_element_type=jnp.float32) + b3
    out_ref[...] = logits.astype(out_ref.dtype)


def init_params(key, num_features, hidden_units=(50, 25), num_classes=2):
    """PyTorch-style init. Linear weights stored transposed as (in, out)."""
    params = []
    fan_in = num_features
    keys = jax.random.split(key, len(hidden_units) + 1)
    for i, h in enumerate(hidden_units):
        bound = 1.0 / jnp.sqrt(float(fan_in))
        kw, kb = jax.random.split(keys[i])
        w = jax.random.uniform(kw, (fan_in, h), jnp.float32, -bound, bound)
        b = jax.random.uniform(kb, (h,), jnp.float32, -bound, bound)
        gamma = jnp.ones((h,), jnp.float32)   # BatchNorm1d default weight
        beta = jnp.zeros((h,), jnp.float32)   # BatchNorm1d default bias
        params.append((w, b, gamma, beta))
        fan_in = h
    bound = 1.0 / jnp.sqrt(float(fan_in))
    kw, kb = jax.random.split(keys[-1])
    w = jax.random.uniform(kw, (fan_in, num_classes), jnp.float32, -bound, bound)
    b = jax.random.uniform(kb, (num_classes,), jnp.float32, -bound, bound)
    params.append((w, b))
    return tuple(params)


def prepare_params(params):
    """One-time packing of ALL parameters into a single lane-dense blob.

    b1/b2 are intentionally discarded (training-mode BN cancels them).
    Padded gamma lanes are zero so padded columns stay exactly 0 through
    BN/ReLU; padded W rows/columns are zero so the matmuls are exact.
    """
    (w1, b1, g1, be1), (w2, b2, g2, be2), (w3, b3) = params
    del b1, b2
    F, h1 = int(w1.shape[0]), int(w1.shape[1])
    h2 = int(w2.shape[1])
    nc = int(w3.shape[1])
    assert h1 <= LANE and h2 <= LANE and nc <= LANE, "dims > 128 need K-tiling"

    f_pad = _round_up(F, 8)
    rows = f_pad + 2 * LANE + 8
    blob = jnp.zeros((rows, LANE), jnp.float32)
    blob = blob.at[:F, :h1].set(w1)                              # W1
    blob = blob.at[f_pad:f_pad + h1, :h2].set(w2)                # W2
    blob = blob.at[f_pad + LANE:f_pad + LANE + h2, :nc].set(w3)  # W3
    r = f_pad + 2 * LANE                                         # param tile
    blob = blob.at[r + 0, :h1].set(g1)
    blob = blob.at[r + 1, :h1].set(be1)
    blob = blob.at[r + 2, :h2].set(g2)
    blob = blob.at[r + 3, :h2].set(be2)
    blob = blob.at[r + 4, :nc].set(b3)

    return dict(blob=blob, num_features=F, f_pad=f_pad, nc=nc)


def mlp_forward(x, prep):
    """x: (B, ...) -> flattened (B, F). prep: output of prepare_params."""
    B = x.shape[0]
    xf = x.reshape(B, -1)  # torch.flatten(x, start_dim=1)
    F, f_pad = prep["num_features"], prep["f_pad"]
    assert xf.shape[1] == F
    if f_pad != F:  # keep the K dimension 8-aligned (zero rows of W1 match)
        xf = jnp.pad(xf, ((0, 0), (0, f_pad - F)))

    kernel = functools.partial(_mlp_kernel, f_pad=f_pad, batch=B)
    vmem = pl.BlockSpec(memory_space=pltpu.MemorySpace.VMEM)

    out_pad = pl.pallas_call(
        kernel,
        out_shape=jax.ShapeDtypeStruct((B, LANE), jnp.float32),
        in_specs=[vmem, vmem],
        out_specs=vmem,
        compiler_params=pltpu.CompilerParams(
            # Everything resident (~hundreds of KiB here); explicit limit is
            # safe across v5e/v6e/v7x and avoids the 16 MiB v5e default bite
            # once B*F grows.
            vmem_limit_bytes=32 * 1024 * 1024,
        ),
    )(xf, prep["blob"])

    return out_pad[:, :prep["nc"]]


def mlp_reference(x, params):
    """Pure-JAX reference mirroring the PyTorch forward (training-mode BN,
    including the b1/b2 biases — BN cancels them, so results must match)."""
    h = x.reshape(x.shape[0], -1)
    (w1, b1, g1, be1), (w2, b2, g2, be2), (w3, b3) = params
    for (w, b, g, be) in ((w1, b1, g1, be1), (w2, b2, g2, be2)):
        h = h @ w + b
        mean = jnp.mean(h, axis=0, keepdims=True)
        var = jnp.mean((h - mean) ** 2, axis=0, keepdims=True)
        h = (h - mean) / jnp.sqrt(var + EPS) * g + be
        h = jnp.maximum(h, 0.0)
    return h @ w3 + b3


if __name__ == "__main__":
    key = jax.random.PRNGKey(0)
    kx, kp = jax.random.split(key)

    # Small input: batch=8, "image" of (4, 8) -> num_features = 32 after flatten.
    x = jax.random.normal(kx, (8, 4, 8), jnp.float32)
    num_features = 4 * 8

    params = init_params(kp, num_features, hidden_units=(50, 25), num_classes=2)
    prep = prepare_params(params)  # one-time packing (not per call)

    out = mlp_forward(x, prep)
    out = jax.block_until_ready(out)

    ref = mlp_reference(x, params)
    assert out.shape == (8, 2)
    assert jnp.allclose(out, ref, atol=1e-4, rtol=1e-4), "mismatch vs reference"

    print("KERNEL_OK")
</pallas_src>

<mosaic_0001>
module attributes {stable_mosaic.version = 11 : i64} {
  func.func @_mlp_kernel(%arg0: memref<8x32xf32, #tpu.memory_space<vmem>>, %arg1: memref<296x128xf32, #tpu.memory_space<vmem>>, %arg2: memref<8x128xf32, #tpu.memory_space<vmem>>) attributes {dimension_semantics = [], scalar_prefetch = 0 : i64, scratch_operands = 0 : i64, tpu.core_type = #tpu.core_type<tc>} {
    %c0 = arith.constant 0 : index
    %c0_0 = arith.constant 0 : index
    %0 = vector.load %arg0[%c0, %c0_0] : memref<8x32xf32, #tpu.memory_space<vmem>>, vector<8x32xf32>
    %c0_1 = arith.constant 0 : index
    %c0_2 = arith.constant 0 : index
    %1 = vector.load %arg1[%c0_1, %c0_2] : memref<296x128xf32, #tpu.memory_space<vmem>>, vector<32x128xf32>
    %c32 = arith.constant 32 : index
    %c0_3 = arith.constant 0 : index
    %2 = vector.load %arg1[%c32, %c0_3] : memref<296x128xf32, #tpu.memory_space<vmem>>, vector<128x128xf32>
    %c160 = arith.constant 160 : index
    %c0_4 = arith.constant 0 : index
    %3 = vector.load %arg1[%c160, %c0_4] : memref<296x128xf32, #tpu.memory_space<vmem>>, vector<128x128xf32>
    %c288 = arith.constant 288 : index
    %c0_5 = arith.constant 0 : index
    %4 = vector.load %arg1[%c288, %c0_5] : memref<296x128xf32, #tpu.memory_space<vmem>>, vector<8x128xf32>
    %5 = vector.extract_strided_slice %4 {offsets = [0, 0], sizes = [1, 128], strides = [1, 1]} : vector<8x128xf32> to vector<1x128xf32>
    %6 = vector.extract_strided_slice %4 {offsets = [1, 0], sizes = [1, 128], strides = [1, 1]} : vector<8x128xf32> to vector<1x128xf32>
    %7 = vector.extract_strided_slice %4 {offsets = [2, 0], sizes = [1, 128], strides = [1, 1]} : vector<8x128xf32> to vector<1x128xf32>
    %8 = vector.extract_strided_slice %4 {offsets = [3, 0], sizes = [1, 128], strides = [1, 1]} : vector<8x128xf32> to vector<1x128xf32>
    %9 = vector.extract_strided_slice %4 {offsets = [4, 0], sizes = [1, 128], strides = [1, 1]} : vector<8x128xf32> to vector<1x128xf32>
    %cst = arith.constant dense<0.000000e+00> : vector<8x128xf32>
    %10 = tpu.matmul %0, %1, %cst {dimension_numbers = #tpu.dot_dimension_numbers<[1], [0], [0], [1], [0, 0, 1, 1], [], []>} : vector<8x32xf32>, vector<32x128xf32>, vector<8x128xf32> -> vector<8x128xf32>
    %cst_6 = arith.constant dense<0.000000e+00> : vector<128xf32>
    %11 = vector.multi_reduction <add>, %10, %cst_6 [0] : vector<8x128xf32> to vector<128xf32>
    %12 = vector.shape_cast %11 : vector<128xf32> to vector<1x128xf32>
    %cst_7 = arith.constant 1.250000e-01 : f32
    %13 = vector.broadcast %cst_7 : f32 to vector<1x128xf32>
    %14 = arith.mulf %12, %13 : vector<1x128xf32>
    %15 = arith.mulf %10, %10 : vector<8x128xf32>
    %cst_8 = arith.constant dense<0.000000e+00> : vector<128xf32>
    %16 = vector.multi_reduction <add>, %15, %cst_8 [0] : vector<8x128xf32> to vector<128xf32>
    %17 = vector.shape_cast %16 : vector<128xf32> to vector<1x128xf32>
    %cst_9 = arith.constant 1.250000e-01 : f32
    %18 = vector.broadcast %cst_9 : f32 to vector<1x128xf32>
    %19 = arith.mulf %17, %18 : vector<1x128xf32>
    %20 = arith.mulf %14, %14 : vector<1x128xf32>
    %21 = arith.subf %19, %20 : vector<1x128xf32>
    %cst_10 = arith.constant 0.000000e+00 : f32
    %22 = vector.broadcast %cst_10 : f32 to vector<1x128xf32>
    %23 = arith.maximumf %21, %22 : vector<1x128xf32>
    %cst_11 = arith.constant 9.99999974E-6 : f32
    %24 = vector.broadcast %cst_11 : f32 to vector<1x128xf32>
    %25 = arith.addf %23, %24 : vector<1x128xf32>
    %26 = math.rsqrt %25 : vector<1x128xf32>
    %27 = arith.mulf %5, %26 : vector<1x128xf32>
    %28 = arith.mulf %14, %27 : vector<1x128xf32>
    %29 = arith.subf %6, %28 : vector<1x128xf32>
    %30 = vector.broadcast %27 : vector<1x128xf32> to vector<8x128xf32>
    %31 = arith.mulf %10, %30 : vector<8x128xf32>
    %32 = vector.broadcast %29 : vector<1x128xf32> to vector<8x128xf32>
    %33 = arith.addf %31, %32 : vector<8x128xf32>
    %cst_12 = arith.constant 0.000000e+00 : f32
    %34 = vector.broadcast %cst_12 : f32 to vector<8x128xf32>
    %35 = arith.maximumf %33, %34 : vector<8x128xf32>
    %cst_13 = arith.constant dense<0.000000e+00> : vector<8x128xf32>
    %36 = tpu.matmul %35, %2, %cst_13 {dimension_numbers = #tpu.dot_dimension_numbers<[1], [0], [0], [1], [0, 0, 1, 1], [], []>} : vector<8x128xf32>, vector<128x128xf32>, vector<8x128xf32> -> vector<8x128xf32>
    %cst_14 = arith.constant dense<0.000000e+00> : vector<128xf32>
    %37 = vector.multi_reduction <add>, %36, %cst_14 [0] : vector<8x128xf32> to vector<128xf32>
    %38 = vector.shape_cast %37 : vector<128xf32> to vector<1x128xf32>
    %cst_15 = arith.constant 1.250000e-01 : f32
    %39 = vector.broadcast %cst_15 : f32 to vector<1x128xf32>
    %40 = arith.mulf %38, %39 : vector<1x128xf32>
    %41 = arith.mulf %36, %36 : vector<8x128xf32>
    %cst_16 = arith.constant dense<0.000000e+00> : vector<128xf32>
    %42 = vector.multi_reduction <add>, %41, %cst_16 [0] : vector<8x128xf32> to vector<128xf32>
    %43 = vector.shape_cast %42 : vector<128xf32> to vector<1x128xf32>
    %cst_17 = arith.constant 1.250000e-01 : f32
    %44 = vector.broadcast %cst_17 : f32 to vector<1x128xf32>
    %45 = arith.mulf %43, %44 : vector<1x128xf32>
    %46 = arith.mulf %40, %40 : vector<1x128xf32>
    %47 = arith.subf %45, %46 : vector<1x128xf32>
    %cst_18 = arith.constant 0.000000e+00 : f32
    %48 = vector.broadcast %cst_18 : f32 to vector<1x128xf32>
    %49 = arith.maximumf %47, %48 : vector<1x128xf32>
    %cst_19 = arith.constant 9.99999974E-6 : f32
    %50 = vector.broadcast %cst_19 : f32 to vector<1x128xf32>
    %51 = arith.addf %49, %50 : vector<1x128xf32>
    %52 = math.rsqrt %51 : vector<1x128xf32>
    %53 = arith.mulf %7, %52 : vector<1x128xf32>
    %54 = arith.mulf %40, %53 : vector<1x128xf32>
    %55 = arith.subf %8, %54 : vector<1x128xf32>
    %56 = vector.broadcast %53 : vector<1x128xf32> to vector<8x128xf32>
    %57 = arith.mulf %36, %56 : vector<8x128xf32>
    %58 = vector.broadcast %55 : vector<1x128xf32> to vector<8x128xf32>
    %59 = arith.addf %57, %58 : vector<8x128xf32>
    %cst_20 = arith.constant 0.000000e+00 : f32
    %60 = vector.broadcast %cst_20 : f32 to vector<8x128xf32>
    %61 = arith.maximumf %59, %60 : vector<8x128xf32>
    %cst_21 = arith.constant dense<0.000000e+00> : vector<8x128xf32>
    %62 = tpu.matmul %61, %3, %cst_21 {dimension_numbers = #tpu.dot_dimension_numbers<[1], [0], [0], [1], [0, 0, 1, 1], [], []>} : vector<8x128xf32>, vector<128x128xf32>, vector<8x128xf32> -> vector<8x128xf32>
    %63 = vector.broadcast %9 : vector<1x128xf32> to vector<8x128xf32>
    %64 = arith.addf %62, %63 : vector<8x128xf32>
    %c0_22 = arith.constant 0 : index
    %c0_23 = arith.constant 0 : index
    %65 = vector.load %arg2[%c0_22, %c0_23] : memref<8x128xf32, #tpu.memory_space<vmem>>, vector<8x128xf32>
    tpu.vector_store %arg2[%c0_22, %c0_23], %64 {strides = array<i32>} : memref<8x128xf32, #tpu.memory_space<vmem>>, vector<8x128xf32>,
    return
  }
}

</mosaic_0001>

<llo_original>
// kernel: tpu_custom_call.1
$region0: #{tpu_custom_call.1}
  #allocation0 [shape = 'u32[]', space=smem, size = 0x4, offset = 0x4, fixed_abs, tag = 'smem constant byte address 0x4 - core index']
  #allocation1 [shape = 'u32[144,128]{1,0:T(1,128)}', space=vmem, size = 0x12000, scoped, tag = 'internal scratch']
  %s0 = inlined_call_operand.hbm [shape: f32[8,32], index: 0, kind: input, shape index: {}]
  %s1 = inlined_call_operand.hbm [shape: f32[296,128], index: 1, kind: input, shape index: {}]
  %s2 = inlined_call_operand.hbm [shape: f32[8,128], index: 2, kind: output, shape index: {}]
  %s3 = sld [smem:[#allocation0]]
  $region26: #{tpu_custom_call.1} parent=0
    _
  %s5 = ssub.s32 1, %s3
  %s6 = scalar_select 0, %s5, %s3
  $region1: #{tpu_custom_call.1} parent=0
    #allocation2 [shape = 'u8[4096]{0}', space=vmem, size = 0x1000, scoped, tag = 'input window, operand 0, single buffered']
    #allocation3 [shape = 's32[1]{0}', space=sflag, size = 0x4, scoped, tag = 'scoped memory for tpu_custom_call.1']
    #allocation4 [shape = 's32[1]{0}', space=sflag, size = 0x4, scoped, tag = 'scoped memory for tpu_custom_call.1']
    #allocation5 [shape = 'u8[151552]{0}', space=vmem, size = 0x25000, scoped, tag = 'input window, operand 1, single buffered']
    #allocation6 [shape = 's32[1]{0}', space=sflag, size = 0x4, scoped, tag = 'scoped memory for tpu_custom_call.1']
    #allocation7 [shape = 'u8[4096]{0}', space=vmem, size = 0x1000, scoped, tag = 'output window, operand 0, single buffered']
    %7 = vsyncpa [#allocation3], 0
    %8 = vsyncpa [#allocation6], 0
    %9 = vsyncpa [#allocation4], 0
    // Predicated region
    $region2: #{tpu_custom_call.1} parent=1 // pred_check
      _
    $region3: #{tpu_custom_call.1} parent=1 // pred_check_branch
      %11 = sbr.rel (0) target = $region5
    $region4: #{tpu_custom_call.1} parent=1 // pred_region
      %s13 = ssub.s32 128, 128
      %14 = vsyncadd [#allocation3], %s13
      %s16 = sshll.u32 [#allocation2], 4
      %s17 = int_to_ptr.vmem [resolvable:$true] %s16
      %19 = dma.hbm_to_vmem [thread:$0]  %s0, 128, %s17, [#allocation3]
    $region5: #{tpu_custom_call.1} parent=1 // pred_fallthru
      _
    // Predicated region
    $region6: #{tpu_custom_call.1} parent=1 // pred_check
      _
    $region7: #{tpu_custom_call.1} parent=1 // pred_check_branch
      %21 = sbr.rel (0) target = $region9
    $region8: #{tpu_custom_call.1} parent=1 // pred_region
      %s23 = ssub.s32 4736, 4736
      %24 = vsyncadd [#allocation6], %s23
      %s25 = sshll.u32 [#allocation5], 4
      %s26 = int_to_ptr.vmem [resolvable:$true] %s25
      %31 = dma.hbm_to_vmem [thread:$0]  %s1, 4736, %s26, [#allocation6], 128, 128, 8
    $region9: #{tpu_custom_call.1} parent=1 // pred_fallthru
      _
    // Predicated region
    $region10: #{tpu_custom_call.1} parent=1 // pred_check
      _
    $region11: #{tpu_custom_call.1} parent=1 // pred_check_branch
      %33 = sbr.rel (0) target = $region13
    $region12: #{tpu_custom_call.1} parent=1 // pred_region
      %34 = dma.done [#allocation3], 128
    $region13: #{tpu_custom_call.1} parent=1 // pred_fallthru
      _
    // Predicated region
    $region14: #{tpu_custom_call.1} parent=1 // pred_check
      _
    $region15: #{tpu_custom_call.1} parent=1 // pred_check_branch
      %36 = sbr.rel (0) target = $region17
    $region16: #{tpu_custom_call.1} parent=1 // pred_region
      %37 = dma.done [#allocation6], 4736
    $region17: #{tpu_custom_call.1} parent=1 // pred_fallthru
      _
    %v38 = vld [vmem:[#allocation2] sm:$0xff]
    %v39 = vld [vmem:[#allocation5] sm:$0xff]
    %v40 = vld [vmem:[#allocation5 + $0x8] sm:$0xff]
    %v41 = vld [vmem:[#allocation5 + $0x10] sm:$0xff]
    %v42 = vld [vmem:[#allocation5 + $0x18] sm:$0xff]
    %v43 = vld [vmem:[#allocation5 + $0x20] sm:$0xff]
    %v44 = vld [vmem:[#allocation5 + $0x28] sm:$0xff]
    %v45 = vld [vmem:[#allocation5 + $0x30] sm:$0xff]
    %v46 = vld [vmem:[#allocation5 + $0x38] sm:$0xff]
    %v47 = vld [vmem:[#allocation5 + $0x40] sm:$0xff]
    %v48 = vld [vmem:[#allocation5 + $0x48] sm:$0xff]
    %v49 = vld [vmem:[#allocation5 + $0x50] sm:$0xff]
    %v50 = vld [vmem:[#allocation5 + $0x58] sm:$0xff]
    %v51 = vld [vmem:[#allocation5 + $0x60] sm:$0xff]
    %v52 = vld [vmem:[#allocation5 + $0x68] sm:$0xff]
    %v53 = vld [vmem:[#allocation5 + $0x70] sm:$0xff]
    %v54 = vld [vmem:[#allocation5 + $0x78] sm:$0xff]
    %v55 = vld [vmem:[#allocation5 + $0x80] sm:$0xff]
    %v56 = vld [vmem:[#allocation5 + $0x88] sm:$0xff]
    %v57 = vld [vmem:[#allocation5 + $0x90] sm:$0xff]
    %v58 = vld [vmem:[#allocation5 + $0x98] sm:$0xff]
    %v59 = vld [vmem:[#allocation5 + $0xa0] sm:$0xff]
    %v60 = vld [vmem:[#allocation5 + $0xa8] sm:$0xff]
    %v61 = vld [vmem:[#allocation5 + $0xb0] sm:$0xff]
    %v62 = vld [vmem:[#allocation5 + $0xb8] sm:$0xff]
    %v63 = vld [vmem:[#allocation5 + $0xc0] sm:$0xff]
    %v64 = vld [vmem:[#allocation5 + $0xc8] sm:$0xff]
    %v65 = vld [vmem:[#allocation5 + $0xd0] sm:$0xff]
    %v66 = vld [vmem:[#allocation5 + $0xd8] sm:$0xff]
    %v67 = vld [vmem:[#allocation5 + $0xe0] sm:$0xff]
    %v68 = vld [vmem:[#allocation5 + $0xe8] sm:$0xff]
    %v69 = vld [vmem:[#allocation5 + $0xf0] sm:$0xff]
    %v70 = vld [vmem:[#allocation5 + $0xf8] sm:$0xff]
    %v71 = vld [vmem:[#allocation5 + $0x100] sm:$0xff]
    %v72 = vld [vmem:[#allocation5 + $0x108] sm:$0xff]
    %v73 = vld [vmem:[#allocation5 + $0x110] sm:$0xff]
    %v74 = vld [vmem:[#allocation5 + $0x118] sm:$0xff]
    %v75 = vld [vmem:[#allocation5 + $0x120] sm:$0xff]
    %vm76 = vcmask 261120
    %v78 = vsel %vm76, %v38, 0
    %80 = vmatprep.subr.mxu0 0.0
    %81 = vmatpush1.msra.mxu0 %v39
    %82 = vmatprep.subr.mxu0 0.0
    %83 = vmatpush1.msra.mxu0 %v40
    %84 = vmatprep.subr.mxu0 0.0
    %85 = vmatpush1.msra.mxu0 %v41
    %86 = vmatprep.subr.mxu0 0.0
    %87 = vmatpush1.msra.mxu0 %v42
    %88 = vmatprep.subr.mxu0 0.0
    %89 = vmatpush1.msra.mxu0 0.0
    %90 = vmatprep.subr.mxu0 0.0
    %91 = vmatpush1.msra.mxu0 0.0
    %92 = vmatprep.subr.mxu0 0.0
    %93 = vmatpush1.msra.mxu0 0.0
    %94 = vmatprep.subr.mxu0 0.0
    %95 = vmatpush1.msra.mxu0 0.0
    %96 = vmatprep.subr.mxu0 0.0
    %97 = vmatpush1.msra.mxu0 0.0
    %98 = vmatprep.subr.mxu0 0.0
    %99 = vmatpush1.msra.mxu0 0.0
    %100 = vmatprep.subr.mxu0 0.0
    %101 = vmatpush1.msra.mxu0 0.0
    %102 = vmatprep.subr.mxu0 0.0
    %103 = vmatpush1.msra.mxu0 0.0
    %104 = vmatprep.subr.mxu0 0.0
    %105 = vmatpush1.msra.mxu0 0.0
    %106 = vmatprep.subr.mxu0 0.0
    %107 = vmatpush1.msra.mxu0 0.0
    %108 = vmatprep.subr.mxu0 0.0
    %109 = vmatpush1.msra.mxu0 0.0
    %110 = vmatprep.subr.mxu0 0.0
    %111 = vmatpush1.msra.mxu0 0.0
    %112 = vmatprep.subr.mxu0 0.0
    %113 = vmatpush1.msra.mxu0 0.0
    %114 = vmatprep.subr.mxu0 0.0
    %115 = vmatpush1.msra.mxu0 0.0
    %116 = vmatprep.subr.mxu0 0.0
    %117 = vmatpush1.msra.mxu0 0.0
    %118 = vmatprep.subr.mxu0 0.0
    %119 = vmatpush1.msra.mxu0 0.0
    %120 = vmatprep.subr.mxu0 0.0
    %121 = vmatpush1.msra.mxu0 0.0
    %122 = vmatprep.subr.mxu0 0.0
    %123 = vmatpush1.msra.mxu0 0.0
    %124 = vmatprep.subr.mxu0 0.0
    %125 = vmatpush1.msra.mxu0 0.0
    %126 = vmatprep.subr.mxu0 0.0
    %127 = vmatpush1.msra.mxu0 0.0
    %128 = vmatprep.subr.mxu0 0.0
    %129 = vmatpush1.msra.mxu0 0.0
    %130 = vmatprep.subr.mxu0 0.0
    %131 = vmatpush1.msra.mxu0 0.0
    %132 = vmatprep.subr.mxu0 0.0
    %133 = vmatpush1.msra.mxu0 0.0
    %134 = vmatprep.subr.mxu0 0.0
    %135 = vmatpush1.msra.mxu0 0.0
    %136 = vmatprep.subr.mxu0 0.0
    %137 = vmatpush1.msra.mxu0 0.0
    %138 = vmatprep.subr.mxu0 0.0
    %139 = vmatpush1.msra.mxu0 0.0
    %140 = vmatprep.subr.mxu0 0.0
    %141 = vmatpush1.msra.mxu0 0.0
    %142 = vmatprep.subr.mxu0 0.0
    %143 = vmatpush1.msra.mxu0 0.0
    %144 = vmatprep.mubr.f32.mxu0 0.0
    %145 = vmatmul.mubr.f32.gmra.mrb[0].mxu0 %v78
    %v146 = vpop.f32.mrb[0].mxu0
    %v147 = vadd.f32 0.0, %v146
    %v148 = vpop.f32.mrb[0].mxu0
    %149 = vdwg.mxu0
    %v150 = vrot.slane %v147, 4
    %v151 = vadd.f32 %v147, %v150
    %v152 = vrot.slane %v151, 2
    %v153 = vadd.f32 %v151, %v152
    %v154 = vrot.slane %v153, 1
    %v155 = vadd.f32 %v153, %v154
    %v156 = vmul.f32 %v155, 0.125
    %v157 = vmul.f32 %v147, %v147
    %v158 = vrot.slane %v157, 4
    %v159 = vadd.f32 %v157, %v158
    %v160 = vrot.slane %v159, 2
    %v161 = vadd.f32 %v159, %v160
    %v162 = vrot.slane %v161, 1
    %v163 = vadd.f32 %v161, %v162
    %v164 = vmul.f32 %v163, 0.125
    %v165 = vmul.f32 %v156, %v156
    %v166 = vsub.f32 %v164, %v165
    %v167 = vmax.f32 %v166, 0.0
    %v168 = vadd.f32 %v167, 1e-05
    %v169 = vrsqrt.pop %v168
    %v170 = vmul.f32 %v75, %v169
    %v171 = vmul.f32 %v156, %v170
    %v173 = vrot.slane %v171, 7
    %v175 = vsub.f32 %v75, %v173
    %v176 = vlaneseq
    %v177 = vshrl.u32 %v176, 7
    %v178 = vsub.s32 0, %v177
    %v179 = vrot.slane %v170, %v178
    %v180 = vmul.f32 %v147, %v179
    %v181 = vlaneseq
    %v182 = vshrl.u32 %v181, 7
    %v183 = vsub.s32 1, %v182
    %v184 = vrot.slane %v175, %v183
    %v185 = vadd.f32 %v180, %v184
    %v186 = vmax.f32 %v185, 0.0
    %187 = vmatprep.subr.mxu0 0.0
    %188 = vmatpush1.msra.mxu0 %v43
    %189 = vmatprep.subr.mxu0 0.0
    %190 = vmatpush1.msra.mxu0 %v44
    %191 = vmatprep.subr.mxu0 0.0
    %192 = vmatpush1.msra.mxu0 %v45
    %193 = vmatprep.subr.mxu0 0.0
    %194 = vmatpush1.msra.mxu0 %v46
    %195 = vmatprep.subr.mxu0 0.0
    %196 = vmatpush1.msra.mxu0 %v47
    %197 = vmatprep.subr.mxu0 0.0
    %198 = vmatpush1.msra.mxu0 %v48
    %199 = vmatprep.subr.mxu0 0.0
    %200 = vmatpush1.msra.mxu0 %v49
    %201 = vmatprep.subr.mxu0 0.0
    %202 = vmatpush1.msra.mxu0 %v50
    %203 = vmatprep.subr.mxu0 0.0
    %204 = vmatpush1.msra.mxu0 %v51
    %205 = vmatprep.subr.mxu0 0.0
    %206 = vmatpush1.msra.mxu0 %v52
    %207 = vmatprep.subr.mxu0 0.0
    %208 = vmatpush1.msra.mxu0 %v53
    %209 = vmatprep.subr.mxu0 0.0
    %210 = vmatpush1.msra.mxu0 %v54
    %211 = vmatprep.subr.mxu0 0.0
    %212 = vmatpush1.msra.mxu0 %v55
    %213 = vmatprep.subr.mxu0 0.0
    %214 = vmatpush1.msra.mxu0 %v56
    %215 = vmatprep.subr.mxu0 0.0
    %216 = vmatpush1.msra.mxu0 %v57
    %217 = vmatprep.subr.mxu0 0.0
    %218 = vmatpush1.msra.mxu0 %v58
    %219 = vmatprep.subr.mxu0 0.0
    %220 = vmatpush1.msra.mxu0 0.0
    %221 = vmatprep.subr.mxu0 0.0
    %222 = vmatpush1.msra.mxu0 0.0
    %223 = vmatprep.subr.mxu0 0.0
    %224 = vmatpush1.msra.mxu0 0.0
    %225 = vmatprep.subr.mxu0 0.0
    %226 = vmatpush1.msra.mxu0 0.0
    %227 = vmatprep.subr.mxu0 0.0
    %228 = vmatpush1.msra.mxu0 0.0
    %229 = vmatprep.subr.mxu0 0.0
    %230 = vmatpush1.msra.mxu0 0.0
    %231 = vmatprep.subr.mxu0 0.0
    %232 = vmatpush1.msra.mxu0 0.0
    %233 = vmatprep.subr.mxu0 0.0
    %234 = vmatpush1.msra.mxu0 0.0
    %235 = vmatprep.subr.mxu0 0.0
    %236 = vmatpush1.msra.mxu0 0.0
    %237 = vmatprep.subr.mxu0 0.0
    %238 = vmatpush1.msra.mxu0 0.0
    %239 = vmatprep.subr.mxu0 0.0
    %240 = vmatpush1.msra.mxu0 0.0
    %241 = vmatprep.subr.mxu0 0.0
    %242 = vmatpush1.msra.mxu0 0.0
    %243 = vmatprep.subr.mxu0 0.0
    %244 = vmatpush1.msra.mxu0 0.0
    %245 = vmatprep.subr.mxu0 0.0
    %246 = vmatpush1.msra.mxu0 0.0
    %247 = vmatprep.subr.mxu0 0.0
    %248 = vmatpush1.msra.mxu0 0.0
    %249 = vmatprep.subr.mxu0 0.0
    %250 = vmatpush1.msra.mxu0 0.0
    %251 = vmatprep.mubr.f32.mxu0 0.0
    %252 = vmatmul.mubr.f32.gmra.mrb[0].mxu0 %v186
    %v253 = vpop.f32.mrb[0].mxu0
    %v254 = vadd.f32 0.0, %v253
    %v255 = vpop.f32.mrb[0].mxu0
    %256 = vdwg.mxu0
    %v257 = vrot.slane %v254, 4
    %v258 = vadd.f32 %v254, %v257
    %v259 = vrot.slane %v258, 2
    %v260 = vadd.f32 %v258, %v259
    %v261 = vrot.slane %v260, 1
    %v262 = vadd.f32 %v260, %v261
    %v263 = vmul.f32 %v262, 0.125
    %v264 = vmul.f32 %v254, %v254
    %v265 = vrot.slane %v264, 4
    %v266 = vadd.f32 %v264, %v265
    %v267 = vrot.slane %v266, 2
    %v268 = vadd.f32 %v266, %v267
    %v269 = vrot.slane %v268, 1
    %v270 = vadd.f32 %v268, %v269
    %v271 = vmul.f32 %v270, 0.125
    %v272 = vmul.f32 %v263, %v263
    %v273 = vsub.f32 %v271, %v272
    %v274 = vmax.f32 %v273, 0.0
    %v275 = vadd.f32 %v274, 1e-05
    %v276 = vrsqrt.pop %v275
    %v277 = vmul.f32 %v75, %v276
    %v278 = vmul.f32 %v263, %v277
    %v280 = vrot.slane %v278, 7
    %v282 = vsub.f32 %v75, %v280
    %v283 = vlaneseq
    %v284 = vshrl.u32 %v283, 7
    %v285 = vsub.s32 2, %v284
    %v286 = vrot.slane %v277, %v285
    %v287 = vmul.f32 %v254, %v286
    %v288 = vlaneseq
    %v289 = vshrl.u32 %v288, 7
    %v290 = vsub.s32 3, %v289
    %v291 = vrot.slane %v282, %v290
    %v292 = vadd.f32 %v287, %v291
    %v293 = vmax.f32 %v292, 0.0
    %v294 = vlaneseq
    %v295 = vshrl.u32 %v294, 7
    %v296 = vsub.s32 4, %v295
    %v297 = vrot.slane %v75, %v296
    %298 = vmatprep.subr.mxu0 0.0
    %299 = vmatpush1.msra.mxu0 %v59
    %300 = vmatprep.subr.mxu0 0.0
    %301 = vmatpush1.msra.mxu0 %v60
    %302 = vmatprep.subr.mxu0 0.0
    %303 = vmatpush1.msra.mxu0 %v61
    %304 = vmatprep.subr.mxu0 0.0
    %305 = vmatpush1.msra.mxu0 %v62
    %306 = vmatprep.subr.mxu0 0.0
    %307 = vmatpush1.msra.mxu0 %v63
    %308 = vmatprep.subr.mxu0 0.0
    %309 = vmatpush1.msra.mxu0 %v64
    %310 = vmatprep.subr.mxu0 0.0
    %311 = vmatpush1.msra.mxu0 %v65
    %312 = vmatprep.subr.mxu0 0.0
    %313 = vmatpush1.msra.mxu0 %v66
    %314 = vmatprep.subr.mxu0 0.0
    %315 = vmatpush1.msra.mxu0 %v67
    %316 = vmatprep.subr.mxu0 0.0
    %317 = vmatpush1.msra.mxu0 %v68
    %318 = vmatprep.subr.mxu0 0.0
    %319 = vmatpush1.msra.mxu0 %v69
    %320 = vmatprep.subr.mxu0 0.0
    %321 = vmatpush1.msra.mxu0 %v70
    %322 = vmatprep.subr.mxu0 0.0
    %323 = vmatpush1.msra.mxu0 %v71
    %324 = vmatprep.subr.mxu0 0.0
    %325 = vmatpush1.msra.mxu0 %v72
    %326 = vmatprep.subr.mxu0 0.0
    %327 = vmatpush1.msra.mxu0 %v73
    %328 = vmatprep.subr.mxu0 0.0
    %329 = vmatpush1.msra.mxu0 %v74
    %330 = vmatprep.subr.mxu0 0.0
    %331 = vmatpush1.msra.mxu0 0.0
    %332 = vmatprep.subr.mxu0 0.0
    %333 = vmatpush1.msra.mxu0 0.0
    %334 = vmatprep.subr.mxu0 0.0
    %335 = vmatpush1.msra.mxu0 0.0
    %336 = vmatprep.subr.mxu0 0.0
    %337 = vmatpush1.msra.mxu0 0.0
    %338 = vmatprep.subr.mxu0 0.0
    %339 = vmatpush1.msra.mxu0 0.0
    %340 = vmatprep.subr.mxu0 0.0
    %341 = vmatpush1.msra.mxu0 0.0
    %342 = vmatprep.subr.mxu0 0.0
    %343 = vmatpush1.msra.mxu0 0.0
    %344 = vmatprep.subr.mxu0 0.0
    %345 = vmatpush1.msra.mxu0 0.0
    %346 = vmatprep.subr.mxu0 0.0
    %347 = vmatpush1.msra.mxu0 0.0
    %348 = vmatprep.subr.mxu0 0.0
    %349 = vmatpush1.msra.mxu0 0.0
    %350 = vmatprep.subr.mxu0 0.0
    %351 = vmatpush1.msra.mxu0 0.0
    %352 = vmatprep.subr.mxu0 0.0
    %353 = vmatpush1.msra.mxu0 0.0
    %354 = vmatprep.subr.mxu0 0.0
    %355 = vmatpush1.msra.mxu0 0.0
    %356 = vmatprep.subr.mxu0 0.0
    %357 = vmatpush1.msra.mxu0 0.0
    %358 = vmatprep.subr.mxu0 0.0
    %359 = vmatpush1.msra.mxu0 0.0
    %360 = vmatprep.subr.mxu0 0.0
    %361 = vmatpush1.msra.mxu0 0.0
    %362 = vmatprep.mubr.f32.mxu0 0.0
    %363 = vmatmul.mubr.f32.gmra.mrb[0].mxu0 %v293
    %v364 = vpop.f32.mrb[0].mxu0
    %v365 = vadd.f32 %v297, %v364
    %v366 = vpop.f32.mrb[0].mxu0
    %367 = vdwg.mxu0
    %368 = vst [vmem:[#allocation7] sm:$0xff] %v365
    // Predicated region
    $region18: #{tpu_custom_call.1} parent=1 // pred_check
      _
    $region19: #{tpu_custom_call.1} parent=1 // pred_check_branch
      %370 = sbr.rel (0) target = $region21
    $region20: #{tpu_custom_call.1} parent=1 // pred_region
      %s372 = ssub.s32 128, 128
      %373 = vsyncadd [#allocation4], %s372
      %s375 = sshll.u32 [#allocation7], 4
      %s376 = int_to_ptr.vmem [resolvable:$true] %s375
      %378 = dma.vmem_to_hbm [thread:$0]  %s376, 128, %s2, [#allocation4]
    $region21: #{tpu_custom_call.1} parent=1 // pred_fallthru
      _
    // Predicated region
    $region22: #{tpu_custom_call.1} parent=1 // pred_check
      _
    $region23: #{tpu_custom_call.1} parent=1 // pred_check_branch
      %380 = sbr.rel (0) target = $region25
    $region24: #{tpu_custom_call.1} parent=1 // pred_region
      %381 = dma.done [#allocation4], 128
    $region25: #{tpu_custom_call.1} parent=1 // pred_fallthru
      _
    %382 = vsyncpa [#allocation3], 1
    %383 = vsyncpa [#allocation6], 1
    %384 = vsyncpa [#allocation4], 1

</llo_original>
